<compile_context>
chip_gen: v6e
topology: v6e:2x2x1
jax: 0.10.0
libtpu: 0.0.40
codegen_flags: <defaults>
</compile_context>

<pallas_src>
import functools

import jax
import jax.numpy as jnp
from jax.experimental import pallas as pl
from jax.experimental.pallas import tpu as pltpu


def _cmff_concat_kernel(x12_ref, x3_ref, wpc_ref, wf_ref, wc1_ref, wc2_ref,
                        bias_ref, out_ref):
  f32 = jnp.float32
  x12 = x12_ref[...]                     # (B, x1_dim + x2_dim)
  x3 = x3_ref[...]                       # (B, x3_dim)

  x12_dim = x12_ref.shape[1]
  d_in = wpc_ref.shape[1]                # 2 * CMFF_input_dim
  cout = wf_ref.shape[1]                 # CMFF_output_dim
  x3_dim = x3_ref.shape[1]
  hid = wc1_ref.shape[1]                 # 256
  out_pad = wc2_ref.shape[1]             # num_classes padded to 128 lanes

  w_proj = wpc_ref[0:x12_dim, :]                 # blockdiag(w1, w2)
  w_cross = wpc_ref[x12_dim:x12_dim + d_in, :]   # [[0, wa2], [wa1, 0]]

  # ---- CMFF (assumed reconstruction, see header TODO) ----
  # [h1 | h2] in one MXU pass.
  h = jnp.maximum(
      jnp.dot(x12, w_proj, preferred_element_type=f32)
      + bias_ref[0:1, 0:d_in], 0.0)
  # [att_MRI | att_SNP] in one MXU pass.
  att = jax.nn.sigmoid(
      jnp.dot(h, w_cross, preferred_element_type=f32)
      + bias_ref[1:2, 0:d_in])
  f = h * att                                      # [h1*att_MRI | h2*att_SNP]
  fusion = jnp.maximum(
      jnp.dot(f, wf_ref[...], preferred_element_type=f32)
      + bias_ref[2:3, 0:cout], 0.0)

  # ---- classifier: concat(fusion, x3) @ wc1 == fusion @ wc1[:cout] + x3 @ wc1[cout:]
  # Two back-to-back dots into one accumulator (MRB-friendly on v7x; the x3 term
  # is off the critical path).
  z1 = jnp.maximum(
      jnp.dot(fusion, wc1_ref[0:cout, :], preferred_element_type=f32)
      + jnp.dot(x3, wc1_ref[cout:cout + x3_dim, :], preferred_element_type=f32)
      + bias_ref[3:4, 0:hid], 0.0)

  # ---- BatchNorm1d, training-mode batch stats (biased var), one-pass form.
  # NOTE: batch statistics are only correct because the FULL batch lives in this
  # single grid point; do NOT tile the batch axis (e.g. for v7x megacore) without
  # hoisting the statistics into a separate pass.
  inv_n = 1.0 / z1.shape[0]
  s1 = jnp.sum(z1, axis=0, keepdims=True)
  s2 = jnp.sum(z1 * z1, axis=0, keepdims=True)
  mean = s1 * inv_n
  var = s2 * inv_n - mean * mean
  z1n = ((z1 - mean) * jax.lax.rsqrt(var + 1e-5)
         * bias_ref[4:5, 0:hid] + bias_ref[5:6, 0:hid])

  # ---- final Linear (lane-padded; padding logits = -1e30 -> prob 0) + softmax
  logit = (jnp.dot(z1n, wc2_ref[...], preferred_element_type=f32)
           + bias_ref[6:7, 0:out_pad])
  m = jnp.max(logit, axis=-1, keepdims=True)
  e = jnp.exp(logit - m)
  denom = jnp.sum(e, axis=-1, keepdims=True)
  out_ref[...] = e * pl.reciprocal(denom, approx=False)


def cmff_concat_forward(x1, x2, x3, packed, num_classes):
  """Single grid point; the whole (tiny) problem is resident in VMEM."""
  w_pc, wf, wc1, wc2_pad, bias = packed
  x12 = jnp.concatenate([x1, x2], axis=1)
  operands = (x12, x3, w_pc, wf, wc1, wc2_pad, bias)

  def full_spec(arr):
    nd = arr.ndim
    return pl.BlockSpec(arr.shape, lambda *_: (0,) * nd)

  out_pad = wc2_pad.shape[1]
  out_shape = jax.ShapeDtypeStruct((x1.shape[0], out_pad), jnp.float32)
  out = pl.pallas_call(
      _cmff_concat_kernel,
      out_shape=out_shape,
      grid=(),
      in_specs=[full_spec(a) for a in operands],
      out_specs=pl.BlockSpec(out_shape.shape, lambda *_: (0, 0)),
      compiler_params=pltpu.CompilerParams(vmem_limit_bytes=32 * 1024 * 1024),
  )(*operands)
  return out[:, :num_classes]


# ------------------------- parameter construction -------------------------

def _kaiming_normal(key, fan_in, fan_out):
  # torch.nn.init.kaiming_normal_ on an (out, in) weight: std = sqrt(2/fan_in).
  std = (2.0 / fan_in) ** 0.5
  return jax.random.normal(key, (fan_in, fan_out), jnp.float32) * std


def make_params(key, x1_dim, x2_dim, x3_dim, cmff_in, cmff_out, num_classes):
  """Per-layer parameters (weights transposed vs PyTorch: (in, out))."""
  ks = jax.random.split(key, 7)
  w1 = _kaiming_normal(ks[0], x1_dim, cmff_in)
  b1 = jnp.zeros((cmff_in,), jnp.float32)
  w2 = _kaiming_normal(ks[1], x2_dim, cmff_in)
  b2 = jnp.zeros((cmff_in,), jnp.float32)
  wa1 = _kaiming_normal(ks[2], cmff_in, cmff_in)
  ba1 = jnp.zeros((cmff_in,), jnp.float32)
  wa2 = _kaiming_normal(ks[3], cmff_in, cmff_in)
  ba2 = jnp.zeros((cmff_in,), jnp.float32)
  wf = _kaiming_normal(ks[4], 2 * cmff_in, cmff_out)
  bf = jnp.zeros((cmff_out,), jnp.float32)
  mlp_in = cmff_out + x3_dim
  wc1 = _kaiming_normal(ks[5], mlp_in, 256)
  bc1 = jnp.zeros((256,), jnp.float32)
  gamma = jnp.ones((256,), jnp.float32)
  beta = jnp.zeros((256,), jnp.float32)
  wc2 = _kaiming_normal(ks[6], 256, num_classes)
  bc2 = jnp.zeros((num_classes,), jnp.float32)
  return (w1, b1, w2, b2, wa1, ba1, wa2, ba2, wf, bf, wc1, bc1,
          gamma, beta, wc2, bc2)


def pack_params(params, num_classes):
  """Host-side packing: fewer DMAs, fewer serial MXU passes in the kernel."""
  (w1, b1, w2, b2, wa1, ba1, wa2, ba2, wf, bf, wc1, bc1,
   gamma, beta, wc2, bc2) = params
  x1d, cin = w1.shape
  x2d = w2.shape[0]
  d_in = 2 * cin
  cout = wf.shape[1]
  hid = wc1.shape[1]
  out_pad = ((num_classes + 127) // 128) * 128

  # [h1|h2] = [x1|x2] @ blockdiag(w1, w2)
  w_proj = jnp.zeros((x1d + x2d, d_in), jnp.float32)
  w_proj = w_proj.at[:x1d, :cin].set(w1)
  w_proj = w_proj.at[x1d:, cin:].set(w2)
  # [att_MRI|att_SNP] = [h1|h2] @ [[0, wa2], [wa1, 0]]
  w_cross = jnp.zeros((d_in, d_in), jnp.float32)
  w_cross = w_cross.at[cin:, :cin].set(wa1)
  w_cross = w_cross.at[:cin, cin:].set(wa2)
  w_pc = jnp.concatenate([w_proj, w_cross], axis=0)   # one slab -> one DMA

  # Final classifier weight padded to a lane-dense (128-wide) output.
  wc2_pad = jnp.zeros((hid, out_pad), jnp.float32).at[:, :num_classes].set(wc2)

  # All bias / BN vectors packed into one (8, W) slab -> one DMA.
  width = max(d_in, cout, hid, out_pad)
  bias = jnp.zeros((8, width), jnp.float32)
  bias = bias.at[0, :d_in].set(jnp.concatenate([b1, b2]))
  bias = bias.at[1, :d_in].set(jnp.concatenate([ba1, ba2]))
  bias = bias.at[2, :cout].set(bf)
  bias = bias.at[3, :hid].set(bc1)
  bias = bias.at[4, :hid].set(gamma)
  bias = bias.at[5, :hid].set(beta)
  bc2_row = jnp.full((out_pad,), -1e30, jnp.float32).at[:num_classes].set(bc2)
  bias = bias.at[6, :out_pad].set(bc2_row)
  return (w_pc, wf, wc1, wc2_pad, bias)


def reference_forward(x1, x2, x3, params):
  """Pure-JAX reference, mirrors the PyTorch forward (two-pass BN stats)."""
  (w1, b1, w2, b2, wa1, ba1, wa2, ba2, wf, bf, wc1, bc1,
   gamma, beta, wc2, bc2) = params
  h1 = jax.nn.relu(x1 @ w1 + b1)
  h2 = jax.nn.relu(x2 @ w2 + b2)
  att_mri = jax.nn.sigmoid(h2 @ wa1 + ba1)
  att_snp = jax.nn.sigmoid(h1 @ wa2 + ba2)
  fusion = jax.nn.relu(jnp.concatenate([h1 * att_mri, h2 * att_snp], axis=1) @ wf + bf)
  x = jnp.concatenate([fusion, x3], axis=1)
  z1 = jax.nn.relu(x @ wc1 + bc1)
  mean = jnp.mean(z1, axis=0, keepdims=True)
  var = jnp.mean((z1 - mean) ** 2, axis=0, keepdims=True)
  z1n = (z1 - mean) / jnp.sqrt(var + 1e-5) * gamma + beta
  logit = z1n @ wc2 + bc2
  return jax.nn.softmax(logit, axis=-1)


if __name__ == "__main__":
  # Small, self-consistent shapes.
  B = 8
  x1_dim, x2_dim, x3_dim = 32, 32, 16
  CMFF_input_dim = 32
  CMFF_output_dim = 32
  num_classes = 4

  key = jax.random.PRNGKey(0)
  k_x1, k_x2, k_x3, k_p = jax.random.split(key, 4)
  x1 = jax.random.normal(k_x1, (B, x1_dim), jnp.float32)
  x2 = jax.random.normal(k_x2, (B, x2_dim), jnp.float32)
  x3 = jax.random.normal(k_x3, (B, x3_dim), jnp.float32)

  params = make_params(k_p, x1_dim, x2_dim, x3_dim,
                       CMFF_input_dim, CMFF_output_dim, num_classes)
  packed = pack_params(params, num_classes)

  fwd = jax.jit(functools.partial(cmff_concat_forward, num_classes=num_classes))
  out = fwd(x1, x2, x3, packed)
  out = jax.block_until_ready(out)

  ref = reference_forward(x1, x2, x3, params)
  assert out.shape == (B, num_classes)
  assert bool(jnp.all(jnp.isfinite(out)))
  # Tolerance slightly loosened vs 1e-5: the one-pass (E[x^2]-E[x]^2) BN stats
  # differ from the two-pass reference by a few f32 ulps.
  assert bool(jnp.allclose(out, ref, atol=2e-5, rtol=2e-5))
  # Softmax rows sum to 1.
  assert bool(jnp.allclose(jnp.sum(out, axis=-1), 1.0, atol=1e-5))

  print("KERNEL_OK")
</pallas_src>

<mosaic_0001>
module attributes {stable_mosaic.version = 11 : i64} {
  func.func @_cmff_concat_kernel(%arg0: memref<8x64xf32, #tpu.memory_space<vmem>>, %arg1: memref<8x16xf32, #tpu.memory_space<vmem>>, %arg2: memref<128x64xf32, #tpu.memory_space<vmem>>, %arg3: memref<64x32xf32, #tpu.memory_space<vmem>>, %arg4: memref<48x256xf32, #tpu.memory_space<vmem>>, %arg5: memref<256x128xf32, #tpu.memory_space<vmem>>, %arg6: memref<8x256xf32, #tpu.memory_space<vmem>>, %arg7: memref<8x128xf32, #tpu.memory_space<vmem>>) attributes {dimension_semantics = [], scalar_prefetch = 0 : i64, scratch_operands = 0 : i64, tpu.core_type = #tpu.core_type<tc>} {
    %c0 = arith.constant 0 : index
    %c0_0 = arith.constant 0 : index
    %0 = vector.load %arg0[%c0, %c0_0] : memref<8x64xf32, #tpu.memory_space<vmem>>, vector<8x64xf32>
    %c0_1 = arith.constant 0 : index
    %c0_2 = arith.constant 0 : index
    %1 = vector.load %arg1[%c0_1, %c0_2] : memref<8x16xf32, #tpu.memory_space<vmem>>, vector<8x16xf32>
    %c0_3 = arith.constant 0 : index
    %c0_4 = arith.constant 0 : index
    %2 = vector.load %arg2[%c0_3, %c0_4] : memref<128x64xf32, #tpu.memory_space<vmem>>, vector<64x64xf32>
    %c64 = arith.constant 64 : index
    %c0_5 = arith.constant 0 : index
    %3 = vector.load %arg2[%c64, %c0_5] : memref<128x64xf32, #tpu.memory_space<vmem>>, vector<64x64xf32>
    %cst = arith.constant dense<0.000000e+00> : vector<8x64xf32>
    %4 = tpu.matmul %0, %2, %cst {dimension_numbers = #tpu.dot_dimension_numbers<[1], [0], [0], [1], [0, 0, 1, 1], [], []>} : vector<8x64xf32>, vector<64x64xf32>, vector<8x64xf32> -> vector<8x64xf32>
    %c0_6 = arith.constant 0 : index
    %c0_7 = arith.constant 0 : index
    %5 = vector.load %arg6[%c0_6, %c0_7] : memref<8x256xf32, #tpu.memory_space<vmem>>, vector<1x64xf32>
    %6 = vector.broadcast %5 : vector<1x64xf32> to vector<8x64xf32>
    %7 = arith.addf %4, %6 : vector<8x64xf32>
    %cst_8 = arith.constant 0.000000e+00 : f32
    %8 = vector.broadcast %cst_8 : f32 to vector<8x64xf32>
    %9 = arith.maximumf %7, %8 : vector<8x64xf32>
    %cst_9 = arith.constant dense<0.000000e+00> : vector<8x64xf32>
    %10 = tpu.matmul %9, %3, %cst_9 {dimension_numbers = #tpu.dot_dimension_numbers<[1], [0], [0], [1], [0, 0, 1, 1], [], []>} : vector<8x64xf32>, vector<64x64xf32>, vector<8x64xf32> -> vector<8x64xf32>
    %c1 = arith.constant 1 : index
    %c0_10 = arith.constant 0 : index
    %11 = vector.load %arg6[%c1, %c0_10] : memref<8x256xf32, #tpu.memory_space<vmem>>, vector<1x64xf32>
    %12 = vector.broadcast %11 : vector<1x64xf32> to vector<8x64xf32>
    %13 = arith.addf %10, %12 : vector<8x64xf32>
    %14 = arith.negf %13 : vector<8x64xf32>
    %15 = math.exp %14 : vector<8x64xf32>
    %cst_11 = arith.constant 1.000000e+00 : f32
    %16 = vector.broadcast %cst_11 : f32 to vector<8x64xf32>
    %17 = arith.addf %16, %15 : vector<8x64xf32>
    %18 = arith.divf %16, %17 : vector<8x64xf32>
    %19 = arith.mulf %9, %18 : vector<8x64xf32>
    %c0_12 = arith.constant 0 : index
    %c0_13 = arith.constant 0 : index
    %20 = vector.load %arg3[%c0_12, %c0_13] : memref<64x32xf32, #tpu.memory_space<vmem>>, vector<64x32xf32>
    %cst_14 = arith.constant dense<0.000000e+00> : vector<8x32xf32>
    %21 = tpu.matmul %19, %20, %cst_14 {dimension_numbers = #tpu.dot_dimension_numbers<[1], [0], [0], [1], [0, 0, 1, 1], [], []>} : vector<8x64xf32>, vector<64x32xf32>, vector<8x32xf32> -> vector<8x32xf32>
    %c2 = arith.constant 2 : index
    %c0_15 = arith.constant 0 : index
    %22 = vector.load %arg6[%c2, %c0_15] : memref<8x256xf32, #tpu.memory_space<vmem>>, vector<1x32xf32>
    %23 = vector.broadcast %22 : vector<1x32xf32> to vector<8x32xf32>
    %24 = arith.addf %21, %23 : vector<8x32xf32>
    %cst_16 = arith.constant 0.000000e+00 : f32
    %25 = vector.broadcast %cst_16 : f32 to vector<8x32xf32>
    %26 = arith.maximumf %24, %25 : vector<8x32xf32>
    %c0_17 = arith.constant 0 : index
    %c0_18 = arith.constant 0 : index
    %27 = vector.load %arg4[%c0_17, %c0_18] : memref<48x256xf32, #tpu.memory_space<vmem>>, vector<32x256xf32>
    %cst_19 = arith.constant dense<0.000000e+00> : vector<8x256xf32>
    %28 = tpu.matmul %26, %27, %cst_19 {dimension_numbers = #tpu.dot_dimension_numbers<[1], [0], [0], [1], [0, 0, 1, 1], [], []>} : vector<8x32xf32>, vector<32x256xf32>, vector<8x256xf32> -> vector<8x256xf32>
    %c32 = arith.constant 32 : index
    %c0_20 = arith.constant 0 : index
    %29 = vector.load %arg4[%c32, %c0_20] : memref<48x256xf32, #tpu.memory_space<vmem>>, vector<16x256xf32>
    %cst_21 = arith.constant dense<0.000000e+00> : vector<8x256xf32>
    %30 = tpu.matmul %1, %29, %cst_21 {dimension_numbers = #tpu.dot_dimension_numbers<[1], [0], [0], [1], [0, 0, 1, 1], [], []>} : vector<8x16xf32>, vector<16x256xf32>, vector<8x256xf32> -> vector<8x256xf32>
    %31 = arith.addf %28, %30 : vector<8x256xf32>
    %c3 = arith.constant 3 : index
    %c0_22 = arith.constant 0 : index
    %32 = vector.load %arg6[%c3, %c0_22] : memref<8x256xf32, #tpu.memory_space<vmem>>, vector<1x256xf32>
    %33 = vector.broadcast %32 : vector<1x256xf32> to vector<8x256xf32>
    %34 = arith.addf %31, %33 : vector<8x256xf32>
    %cst_23 = arith.constant 0.000000e+00 : f32
    %35 = vector.broadcast %cst_23 : f32 to vector<8x256xf32>
    %36 = arith.maximumf %34, %35 : vector<8x256xf32>
    %cst_24 = arith.constant dense<0.000000e+00> : vector<256xf32>
    %37 = vector.multi_reduction <add>, %36, %cst_24 [0] : vector<8x256xf32> to vector<256xf32>
    %38 = vector.shape_cast %37 : vector<256xf32> to vector<1x256xf32>
    %39 = arith.mulf %36, %36 : vector<8x256xf32>
    %cst_25 = arith.constant dense<0.000000e+00> : vector<256xf32>
    %40 = vector.multi_reduction <add>, %39, %cst_25 [0] : vector<8x256xf32> to vector<256xf32>
    %41 = vector.shape_cast %40 : vector<256xf32> to vector<1x256xf32>
    %cst_26 = arith.constant 1.250000e-01 : f32
    %42 = vector.broadcast %cst_26 : f32 to vector<1x256xf32>
    %43 = arith.mulf %38, %42 : vector<1x256xf32>
    %cst_27 = arith.constant 1.250000e-01 : f32
    %44 = vector.broadcast %cst_27 : f32 to vector<1x256xf32>
    %45 = arith.mulf %41, %44 : vector<1x256xf32>
    %46 = arith.mulf %43, %43 : vector<1x256xf32>
    %47 = arith.subf %45, %46 : vector<1x256xf32>
    %48 = vector.broadcast %43 : vector<1x256xf32> to vector<8x256xf32>
    %49 = arith.subf %36, %48 : vector<8x256xf32>
    %cst_28 = arith.constant 9.99999974E-6 : f32
    %50 = vector.broadcast %cst_28 : f32 to vector<1x256xf32>
    %51 = arith.addf %47, %50 : vector<1x256xf32>
    %52 = math.rsqrt %51 : vector<1x256xf32>
    %53 = vector.broadcast %52 : vector<1x256xf32> to vector<8x256xf32>
    %54 = arith.mulf %49, %53 : vector<8x256xf32>
    %c4 = arith.constant 4 : index
    %c0_29 = arith.constant 0 : index
    %55 = vector.load %arg6[%c4, %c0_29] : memref<8x256xf32, #tpu.memory_space<vmem>>, vector<1x256xf32>
    %56 = vector.broadcast %55 : vector<1x256xf32> to vector<8x256xf32>
    %57 = arith.mulf %54, %56 : vector<8x256xf32>
    %c5 = arith.constant 5 : index
    %c0_30 = arith.constant 0 : index
    %58 = vector.load %arg6[%c5, %c0_30] : memref<8x256xf32, #tpu.memory_space<vmem>>, vector<1x256xf32>
    %59 = vector.broadcast %58 : vector<1x256xf32> to vector<8x256xf32>
    %60 = arith.addf %57, %59 : vector<8x256xf32>
    %c0_31 = arith.constant 0 : index
    %c0_32 = arith.constant 0 : index
    %61 = vector.load %arg5[%c0_31, %c0_32] : memref<256x128xf32, #tpu.memory_space<vmem>>, vector<256x128xf32>
    %cst_33 = arith.constant dense<0.000000e+00> : vector<8x128xf32>
    %62 = tpu.matmul %60, %61, %cst_33 {dimension_numbers = #tpu.dot_dimension_numbers<[1], [0], [0], [1], [0, 0, 1, 1], [], []>} : vector<8x256xf32>, vector<256x128xf32>, vector<8x128xf32> -> vector<8x128xf32>
    %c6 = arith.constant 6 : index
    %c0_34 = arith.constant 0 : index
    %63 = vector.load %arg6[%c6, %c0_34] : memref<8x256xf32, #tpu.memory_space<vmem>>, vector<1x128xf32>
    %64 = vector.broadcast %63 : vector<1x128xf32> to vector<8x128xf32>
    %65 = arith.addf %62, %64 : vector<8x128xf32>
    %cst_35 = arith.constant dense<0xFF800000> : vector<8xf32>
    %66 = vector.multi_reduction <maximumf>, %65, %cst_35 [1] : vector<8x128xf32> to vector<8xf32>
    %67 = vector.shape_cast %66 : vector<8xf32> to vector<8x1xf32>
    %68 = vector.broadcast %67 : vector<8x1xf32> to vector<8x128xf32>
    %69 = arith.subf %65, %68 : vector<8x128xf32>
    %70 = math.exp %69 : vector<8x128xf32>
    %cst_36 = arith.constant dense<0.000000e+00> : vector<8xf32>
    %71 = vector.multi_reduction <add>, %70, %cst_36 [1] : vector<8x128xf32> to vector<8xf32>
    %72 = vector.shape_cast %71 : vector<8xf32> to vector<8x1xf32>
    %73 = tpu.reciprocal %72 : vector<8x1xf32> -> vector<8x1xf32>
    %74 = vector.broadcast %73 : vector<8x1xf32> to vector<8x128xf32>
    %75 = arith.mulf %70, %74 : vector<8x128xf32>
    %c0_37 = arith.constant 0 : index
    %c0_38 = arith.constant 0 : index
    %76 = vector.load %arg7[%c0_37, %c0_38] : memref<8x128xf32, #tpu.memory_space<vmem>>, vector<8x128xf32>
    tpu.vector_store %arg7[%c0_37, %c0_38], %75 {strides = array<i32>} : memref<8x128xf32, #tpu.memory_space<vmem>>, vector<8x128xf32>,
    return
  }
}

</mosaic_0001>

<llo_original>
// kernel: cmff_concat_forward.1
$region0: #{cmff_concat_forward.1}
  #allocation0 [shape = 'u32[]', space=smem, size = 0x4, offset = 0x4, fixed_abs, tag = 'smem constant byte address 0x4 - core index']
  #allocation1 [shape = 'u32[144,128]{1,0:T(1,128)}', space=vmem, size = 0x12000, scoped, tag = 'internal scratch']
  %s0 = inlined_call_operand.vmem [shape: f32[8,64], index: 0, kind: input, shape index: {}]
  %s1 = inlined_call_operand.vmem [shape: f32[8,16], index: 1, kind: input, shape index: {}]
  %s2 = inlined_call_operand.vmem [shape: f32[128,64], index: 2, kind: input, shape index: {}]
  %s3 = inlined_call_operand.vmem [shape: f32[64,32], index: 3, kind: input, shape index: {}]
  %s4 = inlined_call_operand.hbm [shape: f32[48,256], index: 4, kind: input, shape index: {}]
  %s5 = inlined_call_operand.vmem [shape: f32[256,128], index: 5, kind: input, shape index: {}]
  %s6 = inlined_call_operand.vmem [shape: f32[8,256], index: 6, kind: input, shape index: {}]
  %s7 = inlined_call_operand.vmem [shape: f32[8,128], index: 7, kind: output, shape index: {}]
  %s8 = sld [smem:[#allocation0]]
  $region42: #{cmff_concat_forward.1} parent=0
    _
  %s10 = ssub.s32 1, %s8
  %s11 = scalar_select 0, %s10, %s8
  $region1: #{cmff_concat_forward.1} parent=0
    #allocation2 [shape = 'u8[49152]{0}', space=vmem, size = 0xc000, scoped, tag = 'input window, operand 4, single buffered']
    #allocation3 [shape = 's32[1]{0}', space=sflag, size = 0x4, scoped, tag = 'scoped memory for cmff_concat_forward.1']
    %12 = vsyncpa [#allocation3], 0
    // Predicated region
    $region2: #{cmff_concat_forward.1} parent=1 // pred_check
      _
    $region3: #{cmff_concat_forward.1} parent=1 // pred_check_branch
      %14 = sbr.rel (0) target = $region5
    $region4: #{cmff_concat_forward.1} parent=1 // pred_region
      _
    $region5: #{cmff_concat_forward.1} parent=1 // pred_fallthru
      _
    // Predicated region
    $region6: #{cmff_concat_forward.1} parent=1 // pred_check
      _
    $region7: #{cmff_concat_forward.1} parent=1 // pred_check_branch
      %16 = sbr.rel (0) target = $region9
    $region8: #{cmff_concat_forward.1} parent=1 // pred_region
      _
    $region9: #{cmff_concat_forward.1} parent=1 // pred_fallthru
      _
    // Predicated region
    $region10: #{cmff_concat_forward.1} parent=1 // pred_check
      _
    $region11: #{cmff_concat_forward.1} parent=1 // pred_check_branch
      %18 = sbr.rel (0) target = $region13
    $region12: #{cmff_concat_forward.1} parent=1 // pred_region
      _
    $region13: #{cmff_concat_forward.1} parent=1 // pred_fallthru
      _
    // Predicated region
    $region14: #{cmff_concat_forward.1} parent=1 // pred_check
      _
    $region15: #{cmff_concat_forward.1} parent=1 // pred_check_branch
      %20 = sbr.rel (0) target = $region17
    $region16: #{cmff_concat_forward.1} parent=1 // pred_region
      _
    $region17: #{cmff_concat_forward.1} parent=1 // pred_fallthru
      _
    // Predicated region
    $region18: #{cmff_concat_forward.1} parent=1 // pred_check
      _
    $region19: #{cmff_concat_forward.1} parent=1 // pred_check_branch
      %22 = sbr.rel (0) target = $region21
    $region20: #{cmff_concat_forward.1} parent=1 // pred_region
      %s24 = ssub.s32 1536, 1536
      %25 = vsyncadd [#allocation3], %s24
      %s26 = sshll.u32 [#allocation2], 4
      %s27 = int_to_ptr.vmem [resolvable:$true] %s26
      %32 = dma.hbm_to_vmem [thread:$0]  %s4, 1536, %s27, [#allocation3], 256, 256, 16
    $region21: #{cmff_concat_forward.1} parent=1 // pred_fallthru
      _
    // Predicated region
    $region22: #{cmff_concat_forward.1} parent=1 // pred_check
      _
    $region23: #{cmff_concat_forward.1} parent=1 // pred_check_branch
      %34 = sbr.rel (0) target = $region25
    $region24: #{cmff_concat_forward.1} parent=1 // pred_region
      _
    $region25: #{cmff_concat_forward.1} parent=1 // pred_fallthru
      _
    // Predicated region
    $region26: #{cmff_concat_forward.1} parent=1 // pred_check
      _
    $region27: #{cmff_concat_forward.1} parent=1 // pred_check_branch
      %36 = sbr.rel (0) target = $region29
    $region28: #{cmff_concat_forward.1} parent=1 // pred_region
      _
    $region29: #{cmff_concat_forward.1} parent=1 // pred_fallthru
      _
    // Predicated region
    $region30: #{cmff_concat_forward.1} parent=1 // pred_check
      _
    $region31: #{cmff_concat_forward.1} parent=1 // pred_check_branch
      %38 = sbr.rel (0) target = $region33
    $region32: #{cmff_concat_forward.1} parent=1 // pred_region
      %39 = dma.done [#allocation3], 1536
    $region33: #{cmff_concat_forward.1} parent=1 // pred_fallthru
      _
    %v40 = vld [vmem:[%s0] sm:$0xff]
    %v41 = vld [vmem:[%s1] sm:$0xff]
    %v42 = vld [vmem:[%s2] sm:$0xff]
    %v43 = vld [vmem:[%s2 + $0x8] sm:$0xff]
    %v44 = vld [vmem:[%s2 + $0x10] sm:$0xff]
    %v45 = vld [vmem:[%s2 + $0x18] sm:$0xff]
    %v46 = vld [vmem:[%s2 + $0x20] sm:$0xff]
    %v47 = vld [vmem:[%s2 + $0x28] sm:$0xff]
    %v48 = vld [vmem:[%s2 + $0x30] sm:$0xff]
    %v49 = vld [vmem:[%s2 + $0x38] sm:$0xff]
    %v50 = vld [vmem:[%s2 + $0x40] sm:$0xff]
    %v51 = vld [vmem:[%s2 + $0x48] sm:$0xff]
    %v52 = vld [vmem:[%s2 + $0x50] sm:$0xff]
    %v53 = vld [vmem:[%s2 + $0x58] sm:$0xff]
    %v54 = vld [vmem:[%s2 + $0x60] sm:$0xff]
    %v55 = vld [vmem:[%s2 + $0x68] sm:$0xff]
    %v56 = vld [vmem:[%s2 + $0x70] sm:$0xff]
    %v57 = vld [vmem:[%s2 + $0x78] sm:$0xff]
    %v58 = vld [vmem:[%s6] ss:$0 sm:$0xff]
    %vm59 = vcmask 523264
    %v61 = vsel %vm59, %v40, 0
    %63 = vmatprep.subr.mxu0 0.0
    %64 = vmatpush1.msra.mxu0 0.0
    %65 = vmatprep.subr.mxu0 0.0
    %66 = vmatpush1.msra.mxu0 0.0
    %67 = vmatprep.subr.mxu0 0.0
    %68 = vmatpush1.msra.mxu0 0.0
    %69 = vmatprep.subr.mxu0 0.0
    %70 = vmatpush1.msra.mxu0 0.0
    %71 = vmatprep.subr.mxu0 0.0
    %72 = vmatpush1.msra.mxu0 0.0
    %73 = vmatprep.subr.mxu0 0.0
    %74 = vmatpush1.msra.mxu0 0.0
    %75 = vmatprep.subr.mxu0 0.0
    %76 = vmatpush1.msra.mxu0 0.0
    %77 = vmatprep.subr.mxu0 0.0
    %78 = vmatpush1.msra.mxu0 0.0
    %79 = vmatprep.subr.mxu0 0.0
    %80 = vmatpush1.msra.mxu0 %v49
    %81 = vmatprep.subr.mxu0 0.0
    %82 = vmatpush1.msra.mxu0 %v48
    %83 = vmatprep.subr.mxu0 0.0
    %84 = vmatpush1.msra.mxu0 %v47
    %85 = vmatprep.subr.mxu0 0.0
    %86 = vmatpush1.msra.mxu0 %v46
    %87 = vmatprep.subr.mxu0 0.0
    %88 = vmatpush1.msra.mxu0 %v45
    %89 = vmatprep.subr.mxu0 0.0
    %90 = vmatpush1.msra.mxu0 %v44
    %91 = vmatprep.subr.mxu0 0.0
    %92 = vmatpush1.msra.mxu0 %v43
    %93 = vmatprep.subr.mxu0 0.0
    %94 = vmatpush1.msra.mxu0 %v42
    %95 = vmatprep.subr.mxu0 0.0
    %96 = vmatpush2.msra.mxu0 0.0
    %97 = vmatprep.subr.mxu0 0.0
    %98 = vmatpush2.msra.mxu0 0.0
    %99 = vmatprep.subr.mxu0 0.0
    %100 = vmatpush2.msra.mxu0 0.0
    %101 = vmatprep.subr.mxu0 0.0
    %102 = vmatpush2.msra.mxu0 0.0
    %103 = vmatprep.subr.mxu0 0.0
    %104 = vmatpush2.msra.mxu0 0.0
    %105 = vmatprep.subr.mxu0 0.0
    %106 = vmatpush2.msra.mxu0 0.0
    %107 = vmatprep.subr.mxu0 0.0
    %108 = vmatpush2.msra.mxu0 0.0
    %109 = vmatprep.subr.mxu0 0.0
    %110 = vmatpush2.msra.mxu0 0.0
    %111 = vmatprep.subr.mxu0 0.0
    %112 = vmatpush2.msra.mxu0 0.0
    %113 = vmatprep.subr.mxu0 0.0
    %114 = vmatpush2.msra.mxu0 0.0
    %115 = vmatprep.subr.mxu0 0.0
    %116 = vmatpush2.msra.mxu0 0.0
    %117 = vmatprep.subr.mxu0 0.0
    %118 = vmatpush2.msra.mxu0 0.0
    %119 = vmatprep.subr.mxu0 0.0
    %120 = vmatpush2.msra.mxu0 0.0
    %121 = vmatprep.subr.mxu0 0.0
    %122 = vmatpush2.msra.mxu0 0.0
    %123 = vmatprep.subr.mxu0 0.0
    %124 = vmatpush2.msra.mxu0 0.0
    %125 = vmatprep.subr.mxu0 0.0
    %126 = vmatpush2.msra.mxu0 0.0
    %127 = vmatprep.mubr.f32.mxu0 0.0
    %128 = vmatmul.mubr.f32.gmra.mxu0 %v61
    %v129 = vpop.f32.mrf.mxu0
    %v130 = vadd.f32 %v58, %v129
    %v131 = vpop.f32.mrf.mxu0
    %132 = vdwg.mxu0
    %v133 = vmax.f32 %v130, 0.0
    %v134 = vld [vmem:[%s6 + $0x1] ss:$0 sm:$0xff]
    %v136 = vsel %vm59, %v133, 0
    %138 = vmatprep.subr.mxu0 0.0
    %139 = vmatpush1.msra.mxu0 0.0
    %140 = vmatprep.subr.mxu0 0.0
    %141 = vmatpush1.msra.mxu0 0.0
    %142 = vmatprep.subr.mxu0 0.0
    %143 = vmatpush1.msra.mxu0 0.0
    %144 = vmatprep.subr.mxu0 0.0
    %145 = vmatpush1.msra.mxu0 0.0
    %146 = vmatprep.subr.mxu0 0.0
    %147 = vmatpush1.msra.mxu0 0.0
    %148 = vmatprep.subr.mxu0 0.0
    %149 = vmatpush1.msra.mxu0 0.0
    %150 = vmatprep.subr.mxu0 0.0
    %151 = vmatpush1.msra.mxu0 0.0
    %152 = vmatprep.subr.mxu0 0.0
    %153 = vmatpush1.msra.mxu0 0.0
    %154 = vmatprep.subr.mxu0 0.0
    %155 = vmatpush1.msra.mxu0 %v57
    %156 = vmatprep.subr.mxu0 0.0
    %157 = vmatpush1.msra.mxu0 %v56
    %158 = vmatprep.subr.mxu0 0.0
    %159 = vmatpush1.msra.mxu0 %v55
    %160 = vmatprep.subr.mxu0 0.0
    %161 = vmatpush1.msra.mxu0 %v54
    %162 = vmatprep.subr.mxu0 0.0
    %163 = vmatpush1.msra.mxu0 %v53
    %164 = vmatprep.subr.mxu0 0.0
    %165 = vmatpush1.msra.mxu0 %v52
    %166 = vmatprep.subr.mxu0 0.0
    %167 = vmatpush1.msra.mxu0 %v51
    %168 = vmatprep.subr.mxu0 0.0
    %169 = vmatpush1.msra.mxu0 %v50
    %170 = vmatprep.subr.mxu0 0.0
    %171 = vmatpush2.msra.mxu0 0.0
    %172 = vmatprep.subr.mxu0 0.0
    %173 = vmatpush2.msra.mxu0 0.0
    %174 = vmatprep.subr.mxu0 0.0
    %175 = vmatpush2.msra.mxu0 0.0
    %176 = vmatprep.subr.mxu0 0.0
    %177 = vmatpush2.msra.mxu0 0.0
    %178 = vmatprep.subr.mxu0 0.0
    %179 = vmatpush2.msra.mxu0 0.0
    %180 = vmatprep.subr.mxu0 0.0
    %181 = vmatpush2.msra.mxu0 0.0
    %182 = vmatprep.subr.mxu0 0.0
    %183 = vmatpush2.msra.mxu0 0.0
    %184 = vmatprep.subr.mxu0 0.0
    %185 = vmatpush2.msra.mxu0 0.0
    %186 = vmatprep.subr.mxu0 0.0
    %187 = vmatpush2.msra.mxu0 0.0
    %188 = vmatprep.subr.mxu0 0.0
    %189 = vmatpush2.msra.mxu0 0.0
    %190 = vmatprep.subr.mxu0 0.0
    %191 = vmatpush2.msra.mxu0 0.0
    %192 = vmatprep.subr.mxu0 0.0
    %193 = vmatpush2.msra.mxu0 0.0
    %194 = vmatprep.subr.mxu0 0.0
    %195 = vmatpush2.msra.mxu0 0.0
    %196 = vmatprep.subr.mxu0 0.0
    %197 = vmatpush2.msra.mxu0 0.0
    %198 = vmatprep.subr.mxu0 0.0
    %199 = vmatpush2.msra.mxu0 0.0
    %200 = vmatprep.subr.mxu0 0.0
    %201 = vmatpush2.msra.mxu0 0.0
    %202 = vmatprep.mubr.f32.mxu0 0.0
    %203 = vmatmul.mubr.f32.gmra.mxu0 %v136
    %v204 = vpop.f32.mrf.mxu0
    %v205 = vadd.f32 %v134, %v204
    %v206 = vpop.f32.mrf.mxu0
    %207 = vdwg.mxu0
    %v208 = vxor.u32 %v205, 2147483648
    %v209 = vmul.f32 %v208, 1.442695
    %v210 = vpow.pop %v209
    %v211 = vadd.f32 %v210, 1.0
    %v212 = vrcp.pop %v211
    %v213 = vmul.f32 1.0, %v212
    %v214 = vmul.f32 %v133, %v213
    %v215 = vld [vmem:[%s3] sm:$0xff]
    %v216 = vld [vmem:[%s3 + $0x8] sm:$0xff]
    %v217 = vld [vmem:[%s3 + $0x10] sm:$0xff]
    %v218 = vld [vmem:[%s3 + $0x18] sm:$0xff]
    %v219 = vld [vmem:[%s3 + $0x20] sm:$0xff]
    %v220 = vld [vmem:[%s3 + $0x28] sm:$0xff]
    %v221 = vld [vmem:[%s3 + $0x30] sm:$0xff]
    %v222 = vld [vmem:[%s3 + $0x38] sm:$0xff]
    %v223 = vld [vmem:[%s6 + $0x2] ss:$0 sm:$0xff]
    %v225 = vsel %vm59, %v214, 0
    %227 = vmatprep.subr.mxu0 0.0
    %228 = vmatpush1.msra.mxu0 0.0
    %229 = vmatprep.subr.mxu0 0.0
    %230 = vmatpush1.msra.mxu0 0.0
    %231 = vmatprep.subr.mxu0 0.0
    %232 = vmatpush1.msra.mxu0 0.0
    %233 = vmatprep.subr.mxu0 0.0
    %234 = vmatpush1.msra.mxu0 0.0
    %235 = vmatprep.subr.mxu0 0.0
    %236 = vmatpush1.msra.mxu0 0.0
    %237 = vmatprep.subr.mxu0 0.0
    %238 = vmatpush1.msra.mxu0 0.0
    %239 = vmatprep.subr.mxu0 0.0
    %240 = vmatpush1.msra.mxu0 0.0
    %241 = vmatprep.subr.mxu0 0.0
    %242 = vmatpush1.msra.mxu0 0.0
    %243 = vmatprep.subr.mxu0 0.0
    %244 = vmatpush1.msra.mxu0 %v222
    %245 = vmatprep.subr.mxu0 0.0
    %246 = vmatpush1.msra.mxu0 %v221
    %247 = vmatprep.subr.mxu0 0.0
    %248 = vmatpush1.msra.mxu0 %v220
    %249 = vmatprep.subr.mxu0 0.0
    %250 = vmatpush1.msra.mxu0 %v219
    %251 = vmatprep.subr.mxu0 0.0
    %252 = vmatpush1.msra.mxu0 %v218
    %253 = vmatprep.subr.mxu0 0.0
    %254 = vmatpush1.msra.mxu0 %v217
    %255 = vmatprep.subr.mxu0 0.0
    %256 = vmatpush1.msra.mxu0 %v216
    %257 = vmatprep.subr.mxu0 0.0
    %258 = vmatpush1.msra.mxu0 %v215
    %259 = vmatprep.subr.mxu0 0.0
    %260 = vmatpush2.msra.mxu0 0.0
    %261 = vmatprep.subr.mxu0 0.0
    %262 = vmatpush2.msra.mxu0 0.0
    %263 = vmatprep.subr.mxu0 0.0
    %264 = vmatpush2.msra.mxu0 0.0
    %265 = vmatprep.subr.mxu0 0.0
    %266 = vmatpush2.msra.mxu0 0.0
    %267 = vmatprep.subr.mxu0 0.0
    %268 = vmatpush2.msra.mxu0 0.0
    %269 = vmatprep.subr.mxu0 0.0
    %270 = vmatpush2.msra.mxu0 0.0
    %271 = vmatprep.subr.mxu0 0.0
    %272 = vmatpush2.msra.mxu0 0.0
    %273 = vmatprep.subr.mxu0 0.0
    %274 = vmatpush2.msra.mxu0 0.0
    %275 = vmatprep.subr.mxu0 0.0
    %276 = vmatpush2.msra.mxu0 0.0
    %277 = vmatprep.subr.mxu0 0.0
    %278 = vmatpush2.msra.mxu0 0.0
    %279 = vmatprep.subr.mxu0 0.0
    %280 = vmatpush2.msra.mxu0 0.0
    %281 = vmatprep.subr.mxu0 0.0
    %282 = vmatpush2.msra.mxu0 0.0
    %283 = vmatprep.subr.mxu0 0.0
    %284 = vmatpush2.msra.mxu0 0.0
    %285 = vmatprep.subr.mxu0 0.0
    %286 = vmatpush2.msra.mxu0 0.0
    %287 = vmatprep.subr.mxu0 0.0
    %288 = vmatpush2.msra.mxu0 0.0
    %289 = vmatprep.subr.mxu0 0.0
    %290 = vmatpush2.msra.mxu0 0.0
    %291 = vmatprep.mubr.f32.mxu0 0.0
    %292 = vmatmul.mubr.f32.gmra.mxu0 %v225
    %v293 = vpop.f32.mrf.mxu0
    %v294 = vadd.f32 %v223, %v293
    %v295 = vpop.f32.mrf.mxu0
    %296 = vdwg.mxu0
    %v297 = vmax.f32 %v294, 0.0
    %v298 = vld [vmem:[#allocation2] sm:$0xff]
    %v299 = vld [vmem:[#allocation2 + $0x8] sm:$0xff]
    %v300 = vld [vmem:[#allocation2 + $0x10] sm:$0xff]
    %v301 = vld [vmem:[#allocation2 + $0x18] sm:$0xff]
    %v302 = vld [vmem:[#allocation2 + $0x20] sm:$0xff]
    %v303 = vld [vmem:[#allocation2 + $0x28] sm:$0xff]
    %v304 = vld [vmem:[#allocation2 + $0x30] sm:$0xff]
    %v305 = vld [vmem:[#allocation2 + $0x38] sm:$0xff]
    %v306 = vld [vmem:[#allocation2 + $0x40] sm:$0xff]
    %v307 = vld [vmem:[#allocation2 + $0x48] sm:$0xff]
    %v308 = vld [vmem:[#allocation2 + $0x50] sm:$0xff]
    %v309 = vld [vmem:[#allocation2 + $0x58] sm:$0xff]
    %vm310 = vcmask 130048
    %v312 = vsel %vm310, %v41, 0
    %314 = vmatprep.subr.mxu0 0.0
    %315 = vmatpush1.msra.mxu0 0.0
    %316 = vmatprep.subr.mxu0 0.0
    %317 = vmatpush1.msra.mxu0 0.0
    %318 = vmatprep.subr.mxu0 0.0
    %319 = vmatpush1.msra.mxu0 0.0
    %320 = vmatprep.subr.mxu0 0.0
    %321 = vmatpush1.msra.mxu0 0.0
    %322 = vmatprep.subr.mxu0 0.0
    %323 = vmatpush1.msra.mxu0 0.0
    %324 = vmatprep.subr.mxu0 0.0
    %325 = vmatpush1.msra.mxu0 0.0
    %326 = vmatprep.subr.mxu0 0.0
    %327 = vmatpush1.msra.mxu0 0.0
    %328 = vmatprep.subr.mxu0 0.0
    %329 = vmatpush1.msra.mxu0 0.0
    %330 = vmatprep.subr.mxu0 0.0
    %331 = vmatpush1.msra.mxu0 0.0
    %332 = vmatprep.subr.mxu0 0.0
    %333 = vmatpush1.msra.mxu0 0.0
    %334 = vmatprep.subr.mxu0 0.0
    %335 = vmatpush1.msra.mxu0 0.0
    %336 = vmatprep.subr.mxu0 0.0
    %337 = vmatpush1.msra.mxu0 0.0
    %338 = vmatprep.subr.mxu0 0.0
    %339 = vmatpush1.msra.mxu0 0.0
    %340 = vmatprep.subr.mxu0 0.0
    %341 = vmatpush1.msra.mxu0 0.0
    %342 = vmatprep.subr.mxu0 %v309
    %343 = vmatpush1.msra.mxu0 %v308
    %344 = vmatprep.subr.mxu0 %v307
    %345 = vmatpush1.msra.mxu0 %v306
    %346 = vmatprep.subr.mxu0 0.0
    %347 = vmatpush2.msra.mxu0 0.0
    %348 = vmatprep.subr.mxu0 0.0
    %349 = vmatpush2.msra.mxu0 0.0
    %350 = vmatprep.subr.mxu0 0.0
    %351 = vmatpush2.msra.mxu0 0.0
    %352 = vmatprep.subr.mxu0 0.0
    %353 = vmatpush2.msra.mxu0 0.0
    %354 = vmatprep.subr.mxu0 0.0
    %355 = vmatpush2.msra.mxu0 0.0
    %356 = vmatprep.subr.mxu0 0.0
    %357 = vmatpush2.msra.mxu0 0.0
    %358 = vmatprep.subr.mxu0 0.0
    %359 = vmatpush2.msra.mxu0 0.0
    %360 = vmatprep.subr.mxu0 0.0
    %361 = vmatpush2.msra.mxu0 0.0
    %362 = vmatprep.subr.mxu0 0.0
    %363 = vmatpush2.msra.mxu0 0.0
    %364 = vmatprep.subr.mxu0 0.0
    %365 = vmatpush2.msra.mxu0 0.0
    %366 = vmatprep.subr.mxu0 0.0
    %367 = vmatpush2.msra.mxu0 0.0
    %368 = vmatprep.subr.mxu0 0.0
    %369 = vmatpush2.msra.mxu0 0.0
    %370 = vmatprep.subr.mxu0 0.0
    %371 = vmatpush2.msra.mxu0 0.0
    %372 = vmatprep.subr.mxu0 0.0
    %373 = vmatpush2.msra.mxu0 0.0
    %374 = vmatprep.subr.mxu0 0.0
    %375 = vmatpush2.msra.mxu0 0.0
    %376 = vmatprep.subr.mxu0 0.0
    %377 = vmatpush2.msra.mxu0 0.0
    %378 = vmatprep.mubr.f32.mxu0 0.0
    %379 = vmatmul.mubr.f32.gmra.mxu0 %v312
    %v380 = vpop.f32.mrf.mxu0
    %v381 = vadd.f32 0.0, %v380
    %v382 = vpop.f32.mrf.mxu0
    %v383 = vadd.f32 0.0, %v382
    %384 = vdwg.mxu0
    %vm385 = vcmask 261120
    %v387 = vsel %vm385, %v297, 0
    %389 = vmatprep.subr.mxu0 0.0
    %390 = vmatpush1.msra.mxu0 0.0
    %391 = vmatprep.subr.mxu0 0.0
    %392 = vmatpush1.msra.mxu0 0.0
    %393 = vmatprep.subr.mxu0 0.0
    %394 = vmatpush1.msra.mxu0 0.0
    %395 = vmatprep.subr.mxu0 0.0
    %396 = vmatpush1.msra.mxu0 0.0
    %397 = vmatprep.subr.mxu0 0.0
    %398 = vmatpush1.msra.mxu0 0.0
    %399 = vmatprep.subr.mxu0 0.0
    %400 = vmatpush1.msra.mxu0 0.0
    %401 = vmatprep.subr.mxu0 0.0
    %402 = vmatpush1.msra.mxu0 0.0
    %403 = vmatprep.subr.mxu0 0.0
    %404 = vmatpush1.msra.mxu0 0.0
    %405 = vmatprep.subr.mxu0 0.0
    %406 = vmatpush1.msra.mxu0 0.0
    %407 = vmatprep.subr.mxu0 0.0
    %408 = vmatpush1.msra.mxu0 0.0
    %409 = vmatprep.subr.mxu0 0.0
    %410 = vmatpush1.msra.mxu0 0.0
    %411 = vmatprep.subr.mxu0 0.0
    %412 = vmatpush1.msra.mxu0 0.0
    %413 = vmatprep.subr.mxu0 %v305
    %414 = vmatpush1.msra.mxu0 %v304
    %415 = vmatprep.subr.mxu0 %v303
    %416 = vmatpush1.msra.mxu0 %v302
    %417 = vmatprep.subr.mxu0 %v301
    %418 = vmatpush1.msra.mxu0 %v300
    %419 = vmatprep.subr.mxu0 %v299
    %420 = vmatpush1.msra.mxu0 %v298
    %421 = vmatprep.subr.mxu0 0.0
    %422 = vmatpush2.msra.mxu0 0.0
    %423 = vmatprep.subr.mxu0 0.0
    %424 = vmatpush2.msra.mxu0 0.0
    %425 = vmatprep.subr.mxu0 0.0
    %426 = vmatpush2.msra.mxu0 0.0
    %427 = vmatprep.subr.mxu0 0.0
    %428 = vmatpush2.msra.mxu0 0.0
    %429 = vmatprep.subr.mxu0 0.0
    %430 = vmatpush2.msra.mxu0 0.0
    %431 = vmatprep.subr.mxu0 0.0
    %432 = vmatpush2.msra.mxu0 0.0
    %433 = vmatprep.subr.mxu0 0.0
    %434 = vmatpush2.msra.mxu0 0.0
    %435 = vmatprep.subr.mxu0 0.0
    %436 = vmatpush2.msra.mxu0 0.0
    %437 = vmatprep.subr.mxu0 0.0
    %438 = vmatpush2.msra.mxu0 0.0
    %439 = vmatprep.subr.mxu0 0.0
    %440 = vmatpush2.msra.mxu0 0.0
    %441 = vmatprep.subr.mxu0 0.0
    %442 = vmatpush2.msra.mxu0 0.0
    %443 = vmatprep.subr.mxu0 0.0
    %444 = vmatpush2.msra.mxu0 0.0
    %445 = vmatprep.subr.mxu0 0.0
    %446 = vmatpush2.msra.mxu0 0.0
    %447 = vmatprep.subr.mxu0 0.0
    %448 = vmatpush2.msra.mxu0 0.0
    %449 = vmatprep.subr.mxu0 0.0
    %450 = vmatpush2.msra.mxu0 0.0
    %451 = vmatprep.subr.mxu0 0.0
    %452 = vmatpush2.msra.mxu0 0.0
    %453 = vmatprep.mubr.f32.mxu0 0.0
    %454 = vmatmul.mubr.f32.gmra.mxu0 %v387
    %v455 = vpop.f32.mrf.mxu0
    %v456 = vadd.f32 %v381, %v455
    %v457 = vpop.f32.mrf.mxu0
    %v458 = vadd.f32 %v383, %v457
    %459 = vdwg.mxu0
    %s460 = scalar_lea.vmem %s6, 3
    %v461 = vld [vmem:[%s460] ss:$8 sm:$0x3]
    %v463 = vlaneseq
    %v464 = vshrl.u32 %v463, 7
    %v465 = vsub.s32 0, %v464
    %v466 = vrot.slane %v461, %v465
    %v467 = vlaneseq
    %v468 = vshrl.u32 %v467, 7
    %v469 = vsub.s32 1, %v468
    %v470 = vrot.slane %v461, %v469
    %v473 = vadd.f32 %v456, %v466
    %v474 = vadd.f32 %v458, %v470
    %v475 = vmax.f32 %v473, 0.0
    %v476 = vmax.f32 %v474, 0.0
    %v477 = vrot.slane %v475, 4
    %v478 = vadd.f32 %v475, %v477
    %v479 = vrot.slane %v478, 2
    %v480 = vadd.f32 %v478, %v479
    %v481 = vrot.slane %v480, 1
    %v482 = vadd.f32 %v480, %v481
    %v483 = vrot.slane %v476, 4
    %v484 = vadd.f32 %v476, %v483
    %v485 = vrot.slane %v484, 2
    %v486 = vadd.f32 %v484, %v485
    %v487 = vrot.slane %v486, 1
    %v488 = vadd.f32 %v486, %v487
    %v489 = vmul.f32 %v475, %v475
    %v490 = vmul.f32 %v476, %v476
    %v491 = vrot.slane %v489, 4
    %v492 = vadd.f32 %v489, %v491
    %v493 = vrot.slane %v492, 2
    %v494 = vadd.f32 %v492, %v493
    %v495 = vrot.slane %v494, 1
    %v496 = vadd.f32 %v494, %v495
    %v497 = vrot.slane %v490, 4
    %v498 = vadd.f32 %v490, %v497
    %v499 = vrot.slane %v498, 2
    %v500 = vadd.f32 %v498, %v499
    %v501 = vrot.slane %v500, 1
    %v502 = vadd.f32 %v500, %v501
    %v503 = vmul.f32 %v482, 0.125
    %v504 = vmul.f32 %v488, 0.125
    %v505 = vmul.f32 %v496, 0.125
    %v506 = vmul.f32 %v502, 0.125
    %v507 = vmul.f32 %v503, %v503
    %v508 = vmul.f32 %v504, %v504
    %v509 = vsub.f32 %v505, %v507
    %v510 = vsub.f32 %v506, %v508
    %v511 = vsub.f32 %v475, %v503
    %v512 = vsub.f32 %v476, %v504
    %v513 = vadd.f32 %v509, 1e-05
    %v514 = vadd.f32 %v510, 1e-05
    %v515 = vrsqrt.pop %v513
    %v516 = vrsqrt.pop %v514
    %v517 = vmul.f32 %v511, %v515
    %v518 = vmul.f32 %v512, %v516
    %s519 = scalar_lea.vmem %s6, 4
    %v520 = vld [vmem:[%s519] ss:$8 sm:$0x3]
    %v522 = vlaneseq
    %v523 = vshrl.u32 %v522, 7
    %v524 = vsub.s32 0, %v523
    %v525 = vrot.slane %v520, %v524
    %v526 = vlaneseq
    %v527 = vshrl.u32 %v526, 7
    %v528 = vsub.s32 1, %v527
    %v529 = vrot.slane %v520, %v528
    %v532 = vmul.f32 %v517, %v525
    %v533 = vmul.f32 %v518, %v529
    %s534 = scalar_lea.vmem %s6, 5
    %v535 = vld [vmem:[%s534] ss:$8 sm:$0x3]
    %v537 = vlaneseq
    %v538 = vshrl.u32 %v537, 7
    %v539 = vsub.s32 0, %v538
    %v540 = vrot.slane %v535, %v539
    %v541 = vlaneseq
    %v542 = vshrl.u32 %v541, 7
    %v543 = vsub.s32 1, %v542
    %v544 = vrot.slane %v535, %v543
    %v547 = vadd.f32 %v532, %v540
    %v548 = vadd.f32 %v533, %v544
    %v549 = vld [vmem:[%s5] sm:$0xff]
    %v550 = vld [vmem:[%s5 + $0x8] sm:$0xff]
    %v551 = vld [vmem:[%s5 + $0x10] sm:$0xff]
    %v552 = vld [vmem:[%s5 + $0x18] sm:$0xff]
    %v553 = vld [vmem:[%s5 + $0x20] sm:$0xff]
    %v554 = vld [vmem:[%s5 + $0x28] sm:$0xff]
    %v555 = vld [vmem:[%s5 + $0x30] sm:$0xff]
    %v556 = vld [vmem:[%s5 + $0x38] sm:$0xff]
    %v557 = vld [vmem:[%s5 + $0x40] sm:$0xff]
    %v558 = vld [vmem:[%s5 + $0x48] sm:$0xff]
    %v559 = vld [vmem:[%s5 + $0x50] sm:$0xff]
    %v560 = vld [vmem:[%s5 + $0x58] sm:$0xff]
    %v561 = vld [vmem:[%s5 + $0x60] sm:$0xff]
    %v562 = vld [vmem:[%s5 + $0x68] sm:$0xff]
    %v563 = vld [vmem:[%s5 + $0x70] sm:$0xff]
    %v564 = vld [vmem:[%s5 + $0x78] sm:$0xff]
    %v565 = vld [vmem:[%s5 + $0x80] sm:$0xff]
    %v566 = vld [vmem:[%s5 + $0x88] sm:$0xff]
    %v567 = vld [vmem:[%s5 + $0x90] sm:$0xff]
    %v568 = vld [vmem:[%s5 + $0x98] sm:$0xff]
    %v569 = vld [vmem:[%s5 + $0xa0] sm:$0xff]
    %v570 = vld [vmem:[%s5 + $0xa8] sm:$0xff]
    %v571 = vld [vmem:[%s5 + $0xb0] sm:$0xff]
    %v572 = vld [vmem:[%s5 + $0xb8] sm:$0xff]
    %v573 = vld [vmem:[%s5 + $0xc0] sm:$0xff]
    %v574 = vld [vmem:[%s5 + $0xc8] sm:$0xff]
    %v575 = vld [vmem:[%s5 + $0xd0] sm:$0xff]
    %v576 = vld [vmem:[%s5 + $0xd8] sm:$0xff]
    %v577 = vld [vmem:[%s5 + $0xe0] sm:$0xff]
    %v578 = vld [vmem:[%s5 + $0xe8] sm:$0xff]
    %v579 = vld [vmem:[%s5 + $0xf0] sm:$0xff]
    %v580 = vld [vmem:[%s5 + $0xf8] sm:$0xff]
    %v581 = vld [vmem:[%s6 + $0x6] ss:$0 sm:$0xff]
    %582 = vmatprep.subr.mxu0 0.0
    %583 = vmatpush1.msra.mxu0 %v564
    %584 = vmatprep.subr.mxu0 0.0
    %585 = vmatpush1.msra.mxu0 %v563
    %586 = vmatprep.subr.mxu0 0.0
    %587 = vmatpush1.msra.mxu0 %v562
    %588 = vmatprep.subr.mxu0 0.0
    %589 = vmatpush1.msra.mxu0 %v561
    %590 = vmatprep.subr.mxu0 0.0
    %591 = vmatpush1.msra.mxu0 %v560
    %592 = vmatprep.subr.mxu0 0.0
    %593 = vmatpush1.msra.mxu0 %v559
    %594 = vmatprep.subr.mxu0 0.0
    %595 = vmatpush1.msra.mxu0 %v558
    %596 = vmatprep.subr.mxu0 0.0
    %597 = vmatpush1.msra.mxu0 %v557
    %598 = vmatprep.subr.mxu0 0.0
    %599 = vmatpush1.msra.mxu0 %v556
    %600 = vmatprep.subr.mxu0 0.0
    %601 = vmatpush1.msra.mxu0 %v555
    %602 = vmatprep.subr.mxu0 0.0
    %603 = vmatpush1.msra.mxu0 %v554
    %604 = vmatprep.subr.mxu0 0.0
    %605 = vmatpush1.msra.mxu0 %v553
    %606 = vmatprep.subr.mxu0 0.0
    %607 = vmatpush1.msra.mxu0 %v552
    %608 = vmatprep.subr.mxu0 0.0
    %609 = vmatpush1.msra.mxu0 %v551
    %610 = vmatprep.subr.mxu0 0.0
    %611 = vmatpush1.msra.mxu0 %v550
    %612 = vmatprep.subr.mxu0 0.0
    %613 = vmatpush1.msra.mxu0 %v549
    %614 = vmatprep.subr.mxu0 0.0
    %615 = vmatpush2.msra.mxu0 %v580
    %616 = vmatprep.subr.mxu0 0.0
    %617 = vmatpush2.msra.mxu0 %v579
    %618 = vmatprep.subr.mxu0 0.0
    %619 = vmatpush2.msra.mxu0 %v578
    %620 = vmatprep.subr.mxu0 0.0
    %621 = vmatpush2.msra.mxu0 %v577
    %622 = vmatprep.subr.mxu0 0.0
    %623 = vmatpush2.msra.mxu0 %v576
    %624 = vmatprep.subr.mxu0 0.0
    %625 = vmatpush2.msra.mxu0 %v575
    %626 = vmatprep.subr.mxu0 0.0
    %627 = vmatpush2.msra.mxu0 %v574
    %628 = vmatprep.subr.mxu0 0.0
    %629 = vmatpush2.msra.mxu0 %v573
    %630 = vmatprep.subr.mxu0 0.0
    %631 = vmatpush2.msra.mxu0 %v572
    %632 = vmatprep.subr.mxu0 0.0
    %633 = vmatpush2.msra.mxu0 %v571
    %634 = vmatprep.subr.mxu0 0.0
    %635 = vmatpush2.msra.mxu0 %v570
    %636 = vmatprep.subr.mxu0 0.0
    %637 = vmatpush2.msra.mxu0 %v569
    %638 = vmatprep.subr.mxu0 0.0
    %639 = vmatpush2.msra.mxu0 %v568
    %640 = vmatprep.subr.mxu0 0.0
    %641 = vmatpush2.msra.mxu0 %v567
    %642 = vmatprep.subr.mxu0 0.0
    %643 = vmatpush2.msra.mxu0 %v566
    %644 = vmatprep.subr.mxu0 0.0
    %645 = vmatpush2.msra.mxu0 %v565
    %646 = vmatprep.mubr.f32.mxu0 %v548
    %647 = vmatmul.mubr.f32.gmra.mxu0 %v547
    %v648 = vpop.f32.mrf.mxu0
    %v649 = vadd.f32 %v581, %v648
    %v650 = vpop.f32.mrf.mxu0
    %651 = vdwg.mxu0
    %652 = vmax.xlane.f32.xlu0 %v649
    %v653 = vpop.xlane.xlu0 %652
    %v654 = vsub.f32 %v649, %v653
    %v655 = vmul.f32 %v654, 1.442695
    %v656 = vpow.pop %v655
    %657 = vadd.xlane.f32.xlu0 %v656
    %v658 = vpop.xlane.xlu0 %657
    %v659 = vrcp.pop %v658
    %v660 = vmul.f32 %v656, %v659
    %661 = vst [vmem:[%s7] sm:$0xff] %v660
    // Predicated region
    $region34: #{cmff_concat_forward.1} parent=1 // pred_check
      _
    $region35: #{cmff_concat_forward.1} parent=1 // pred_check_branch
      %663 = sbr.rel (0) target = $region37
    $region36: #{cmff_concat_forward.1} parent=1 // pred_region
      _
    $region37: #{cmff_concat_forward.1} parent=1 // pred_fallthru
      _
    // Predicated region
    $region38: #{cmff_concat_forward.1} parent=1 // pred_check
      _
    $region39: #{cmff_concat_forward.1} parent=1 // pred_check_branch
      %665 = sbr.rel (0) target = $region41
    $region40: #{cmff_concat_forward.1} parent=1 // pred_region
      _
    $region41: #{cmff_concat_forward.1} parent=1 // pred_fallthru
      _
    %666 = vsyncpa [#allocation3], 1

</llo_original>
